<compile_context>
chip_gen: v7x
topology: tpu7x:2x2x1
jax: 0.10.0
libtpu: 0.0.40
codegen_flags: <defaults>
</compile_context>

<pallas_src>
import math
import numpy as np
import jax
import jax.numpy as jnp
from jax.experimental import pallas as pl
from jax.experimental.pallas import tpu as pltpu


def _round_up(x, m):
    return ((x + m - 1) // m) * m


def conv1d_mm_kernel(x_ref, w_ref, b_ref, o_ref):
    # x_ref: (TILE_R, CKG)    bf16  packed im2col rows (G output rows per packed row)
    # w_ref: (CKG, NL_pad)    bf16  block-diagonal weight
    # b_ref: (1, NL_pad)      f32   packed bias
    # o_ref: (TILE_R, NL_pad)       packed output rows
    acc = jnp.dot(x_ref[...], w_ref[...], preferred_element_type=jnp.float32)
    o_ref[...] = (acc + b_ref[...]).astype(o_ref.dtype)


def conv1d_same(x, weight, bias=None, *, stride=1, out_dtype=jnp.float32,
                vmem_budget_bytes=24 * 1024 * 1024, max_tile_rows=4096):
    """x: (B, L, C_in), weight: (C_out, C_in, K) [PyTorch nn.Conv1d layout],
    bias: (C_out,) or None.  Returns (B, L_out, C_out) in `out_dtype`, matching
    nn.Conv1d(padding=K//2, stride=stride) applied along L."""
    B, L, C_in = x.shape
    C_out, C_in_w, K = weight.shape
    assert C_in_w == C_in
    pad = K // 2
    L_out = (L + 2 * pad - K) // stride + 1

    # ---- lane packing: G consecutive output rows share the 128-lane axis ----
    # Prefer G with G*C_out a multiple of 128 (unmasked, lane-dense stores);
    # fall back and zero-pad the packed columns to 128 when that would blow up
    # the contraction width.
    G = math.lcm(C_out, 128) // C_out
    if G > 128 or G * K * C_in > 4096:
        G = max(1, 128 // C_out)
    CK = K * C_in
    CKG = G * CK                         # packed contraction width
    NL = G * C_out                       # packed output width
    NL_pad = _round_up(NL, 128)

    L_out_pack = -(-L_out // G)          # packed rows per batch
    L_out_pad = L_out_pack * G
    total_rows = B * L_out_pack          # flattened 1-D grid over packed rows

    # ---- tile size from a VMEM budget (amortize the fixed per-step cost) ----
    out_itemsize = jnp.dtype(out_dtype).itemsize
    w_bytes = CKG * NL_pad * 2 + NL_pad * 4
    per_row = 2 * (CKG * 2 + NL_pad * out_itemsize)      # double-buffered x + out
    avail = max(vmem_budget_bytes - 2 * w_bytes, per_row * 16)
    tile_r = min((avail // per_row) // 16 * 16,          # multiple of 16 (bf16 sublanes)
                 max_tile_rows,
                 _round_up(total_rows, 16))
    tile_r = max(16, tile_r)
    rows_pad = _round_up(total_rows, tile_r)

    # ---- wrapper-side im2col (bf16 throughout; handles stride/halo/padding) ---
    # TODO(synk): an in-kernel halo-tile im2col (memory_space=pl.ANY + manual DMA)
    # would cut the remaining ~K x input HBM traffic for very long sequences.
    L_in_needed = (L_out_pad - 1) * stride + K
    right_pad = max(0, L_in_needed - (L + pad))
    x_pad = jnp.pad(x.astype(jnp.bfloat16), ((0, 0), (pad, right_pad), (0, 0)))
    cols = [x_pad[:, k:k + (L_out_pad - 1) * stride + 1:stride, :] for k in range(K)]
    x_cols = jnp.concatenate(cols, axis=-1)              # (B, L_out_pad, K*C_in)
    x_cols = x_cols.reshape(B * L_out_pack, CKG)         # pack G rows into lanes
    if rows_pad > total_rows:
        x_cols = jnp.pad(x_cols, ((0, rows_pad - total_rows), (0, 0)))

    # (C_out, C_in, K) -> (K*C_in, C_out); block-diagonal G copies; pad lanes.
    w2 = jnp.transpose(weight.astype(jnp.float32), (2, 1, 0)).reshape(CK, C_out)
    w_bd = jnp.kron(jnp.eye(G, dtype=jnp.float32), w2)            # (CKG, NL)
    b = bias.astype(jnp.float32) if bias is not None else jnp.zeros((C_out,), jnp.float32)
    b_packed = jnp.tile(b, G)                                     # (NL,)
    if NL_pad > NL:
        w_bd = jnp.pad(w_bd, ((0, 0), (0, NL_pad - NL)))
        b_packed = jnp.pad(b_packed, (0, NL_pad - NL))
    w_bd = w_bd.astype(jnp.bfloat16)
    b_packed = b_packed.reshape(1, NL_pad)

    cost = pl.CostEstimate(
        flops=2 * rows_pad * CKG * NL_pad,
        transcendentals=0,
        bytes_accessed=(rows_pad * CKG * 2 + CKG * NL_pad * 2 + NL_pad * 4
                        + rows_pad * NL_pad * out_itemsize),
    )

    out_packed = pl.pallas_call(
        conv1d_mm_kernel,
        out_shape=jax.ShapeDtypeStruct((rows_pad, NL_pad), out_dtype),
        grid=(rows_pad // tile_r,),
        in_specs=[
            pl.BlockSpec((tile_r, CKG), lambda r: (r, 0)),
            pl.BlockSpec((CKG, NL_pad), lambda r: (0, 0)),
            pl.BlockSpec((1, NL_pad), lambda r: (0, 0)),
        ],
        out_specs=pl.BlockSpec((tile_r, NL_pad), lambda r: (r, 0)),
        compiler_params=pltpu.CompilerParams(
            dimension_semantics=("parallel",),
            vmem_limit_bytes=32 * 1024 * 1024,   # safe across v5e/v6e/v7x
        ),
        cost_estimate=cost,
    )(x_cols, w_bd, b_packed)

    # Unpack lanes back to rows and drop row/lane padding.
    out = out_packed[:total_rows, :NL].reshape(B, L_out_pad, C_out)[:, :L_out, :]
    return out


def _conv1d_ref(x, weight, bias, stride):
    K = weight.shape[-1]
    x_ncl = jnp.transpose(x, (0, 2, 1))
    y = jax.lax.conv_general_dilated(
        x_ncl, weight, (stride,), [(K // 2, K // 2)],
        dimension_numbers=("NCH", "OIH", "NCH"),
    )
    y = jnp.transpose(y, (0, 2, 1))
    if bias is not None:
        y = y + bias[None, None, :]
    return y


if __name__ == "__main__":
    def check(B, L, C_in, C_out, K, stride, key):
        kx, kw, kb = jax.random.split(key, 3)
        x = jax.random.normal(kx, (B, L, C_in), dtype=jnp.float32)
        # Deterministic PyTorch-Conv1d-style uniform init.
        bound = 1.0 / np.sqrt(C_in * K)
        weight = jax.random.uniform(kw, (C_out, C_in, K), jnp.float32, -bound, bound)
        bias = jax.random.uniform(kb, (C_out,), jnp.float32, -bound, bound)

        out = jax.block_until_ready(conv1d_same(x, weight, bias, stride=stride))
        ref = _conv1d_ref(x, weight, bias, stride)
        L_out = (L + 2 * (K // 2) - K) // stride + 1
        assert out.shape == (B, L_out, C_out), (out.shape, (B, L_out, C_out))
        # bf16 MXU inputs with f32 accumulation -> loosened tolerance.
        assert np.allclose(np.asarray(out, np.float32), np.asarray(ref),
                           atol=2e-2, rtol=2e-2)

    # Small shapes implied by the forward: x is (batch, seq_len, in_channels).
    check(2, 16, 4, 8, 3, 1, jax.random.PRNGKey(0))
    # stride > 1 and a C_out that does not divide 128 (lcm lane-packing path).
    check(2, 21, 4, 6, 3, 2, jax.random.PRNGKey(1))
    # Fallback path: NL < 128 -> zero-padded lane columns, sliced afterwards.
    check(2, 16, 48, 3, 3, 1, jax.random.PRNGKey(2))

    print("KERNEL_OK")
</pallas_src>

<mosaic_0001>
module attributes {stable_mosaic.version = 11 : i64} {
  func.func @conv1d_mm_kernel(%arg0: i32, %arg1: memref<16x192xbf16, #tpu.memory_space<vmem>>, %arg2: memref<192x128xbf16, #tpu.memory_space<vmem>>, %arg3: memref<1x128xf32, #tpu.memory_space<vmem>>, %arg4: memref<16x128xf32, #tpu.memory_space<vmem>>) attributes {dimension_semantics = [#tpu.dimension_semantics<parallel>], iteration_bounds = array<i64: 1>, scalar_prefetch = 0 : i64, scratch_operands = 0 : i64, tpu.core_type = #tpu.core_type<tc>, window_params = [{transform_indices = @transform_0, window_bounds = array<i64: 16, 192>}, {pipeline_mode = #tpu.pipeline_mode<synchronous>, transform_indices = @transform_1, window_bounds = array<i64: 192, 128>}, {pipeline_mode = #tpu.pipeline_mode<synchronous>, transform_indices = @transform_2, window_bounds = array<i64: 1, 128>}, {transform_indices = @transform_3, window_bounds = array<i64: 16, 128>}]} {
    %c0 = arith.constant 0 : index
    %c0_0 = arith.constant 0 : index
    %0 = vector.load %arg1[%c0, %c0_0] : memref<16x192xbf16, #tpu.memory_space<vmem>>, vector<16x192xbf16>
    %c0_1 = arith.constant 0 : index
    %c0_2 = arith.constant 0 : index
    %1 = vector.load %arg2[%c0_1, %c0_2] : memref<192x128xbf16, #tpu.memory_space<vmem>>, vector<192x128xbf16>
    %cst = arith.constant dense<0.000000e+00> : vector<16x128xf32>
    %2 = tpu.matmul %0, %1, %cst {dimension_numbers = #tpu.dot_dimension_numbers<[1], [0], [0], [1], [0, 0, 1, 1], [], []>} : vector<16x192xbf16>, vector<192x128xbf16>, vector<16x128xf32> -> vector<16x128xf32>
    %c0_3 = arith.constant 0 : index
    %c0_4 = arith.constant 0 : index
    %3 = vector.load %arg3[%c0_3, %c0_4] : memref<1x128xf32, #tpu.memory_space<vmem>>, vector<1x128xf32>
    %4 = vector.broadcast %3 : vector<1x128xf32> to vector<16x128xf32>
    %5 = arith.addf %2, %4 : vector<16x128xf32>
    %c0_5 = arith.constant 0 : index
    %c0_6 = arith.constant 0 : index
    %6 = vector.load %arg4[%c0_5, %c0_6] : memref<16x128xf32, #tpu.memory_space<vmem>>, vector<16x128xf32>
    tpu.vector_store %arg4[%c0_5, %c0_6], %5 {strides = array<i32>} : memref<16x128xf32, #tpu.memory_space<vmem>>, vector<16x128xf32>,
    return
  }
  func.func @transform_0(%arg0: i32) -> (i32, i32) {
    %c0_i32 = arith.constant 0 : i32
    %c0_i32_0 = arith.constant 0 : i32
    return %arg0, %c0_i32 : i32, i32
  }
  func.func @transform_1(%arg0: i32) -> (i32, i32) {
    %c0_i32 = arith.constant 0 : i32
    %c0_i32_0 = arith.constant 0 : i32
    %c0_i32_1 = arith.constant 0 : i32
    return %c0_i32, %c0_i32_0 : i32, i32
  }
  func.func @transform_2(%arg0: i32) -> (i32, i32) {
    %c0_i32 = arith.constant 0 : i32
    %c0_i32_0 = arith.constant 0 : i32
    %c0_i32_1 = arith.constant 0 : i32
    return %c0_i32, %c0_i32_0 : i32, i32
  }
  func.func @transform_3(%arg0: i32) -> (i32, i32) {
    %c0_i32 = arith.constant 0 : i32
    %c0_i32_0 = arith.constant 0 : i32
    return %arg0, %c0_i32 : i32, i32
  }
}

</mosaic_0001>

<llo_original>
// kernel: tpu_custom_call.1
$region0: #{tpu_custom_call.1}
  #allocation0 [shape = 'u32[]', space=smem, size = 0x4, offset = 0x4, fixed_abs, tag = 'smem constant byte address 0x4 - core index']
  #allocation1 [shape = 'u32[144,128]{1,0:T(1,128)}', space=vmem, size = 0x12000, scoped, tag = 'internal scratch']
  %s0 = inlined_call_operand.hbm [shape: bf16[16,192], index: 0, kind: input, shape index: {}]
  %s1 = inlined_call_operand.hbm [shape: bf16[192,128], index: 1, kind: input, shape index: {}]
  %s2 = inlined_call_operand.vmem [shape: f32[1,128], index: 2, kind: input, shape index: {}]
  %s3 = inlined_call_operand.hbm [shape: f32[16,128], index: 3, kind: output, shape index: {}]
  %s4 = sld [smem:[#allocation0]]
  $region30: #{tpu_custom_call.1} parent=0
    _
  %s6 = ssub.s32 1, %s4
  %s7 = scalar_select 0, %s6, %s4
  $region1: #{tpu_custom_call.1} parent=0
    #allocation2 [shape = 'u8[8192]{0}', space=vmem, size = 0x2000, scoped, tag = 'input window, operand 0, single buffered']
    #allocation3 [shape = 's32[1]{0}', space=sflag, size = 0x4, scoped, tag = 'scoped memory for tpu_custom_call.1']
    #allocation4 [shape = 's32[1]{0}', space=sflag, size = 0x4, scoped, tag = 'scoped memory for tpu_custom_call.1']
    #allocation5 [shape = 'u8[49152]{0}', space=vmem, size = 0xc000, scoped, tag = 'input window, operand 1, single buffered']
    #allocation6 [shape = 's32[1]{0}', space=sflag, size = 0x4, scoped, tag = 'scoped memory for tpu_custom_call.1']
    #allocation7 [shape = 'u8[8192]{0}', space=vmem, size = 0x2000, scoped, tag = 'output window, operand 0, single buffered']
    %8 = vsyncpa [#allocation3], 0
    %9 = vsyncpa [#allocation6], 0
    %10 = vsyncpa [#allocation4], 0
    // Predicated region
    $region2: #{tpu_custom_call.1} parent=1 // pred_check
      _
    $region3: #{tpu_custom_call.1} parent=1 // pred_check_branch
      %12 = sbr.rel (0) target = $region5
    $region4: #{tpu_custom_call.1} parent=1 // pred_region
      %s14 = ssub.s32 256, 256
      %15 = vsyncadd [#allocation3], %s14
      %s16 = sshll.u32 [#allocation2], 4
      %s17 = int_to_ptr.vmem [resolvable:$true] %s16
      %22 = dma.hbm_to_vmem [thread:$0]  %s0, 256, %s17, [#allocation3], 128, 128, 8
    $region5: #{tpu_custom_call.1} parent=1 // pred_fallthru
      _
    // Predicated region
    $region6: #{tpu_custom_call.1} parent=1 // pred_check
      _
    $region7: #{tpu_custom_call.1} parent=1 // pred_check_branch
      %24 = sbr.rel (0) target = $region9
    $region8: #{tpu_custom_call.1} parent=1 // pred_region
      %s26 = ssub.s32 1536, 1536
      %27 = vsyncadd [#allocation6], %s26
      %s28 = sshll.u32 [#allocation5], 4
      %s29 = int_to_ptr.vmem [resolvable:$true] %s28
      %34 = dma.hbm_to_vmem [thread:$0]  %s1, 1536, %s29, [#allocation6], 64, 64, 4
    $region9: #{tpu_custom_call.1} parent=1 // pred_fallthru
      _
    // Predicated region
    $region10: #{tpu_custom_call.1} parent=1 // pred_check
      _
    $region11: #{tpu_custom_call.1} parent=1 // pred_check_branch
      %36 = sbr.rel (0) target = $region13
    $region12: #{tpu_custom_call.1} parent=1 // pred_region
      _
    $region13: #{tpu_custom_call.1} parent=1 // pred_fallthru
      _
    // Predicated region
    $region14: #{tpu_custom_call.1} parent=1 // pred_check
      _
    $region15: #{tpu_custom_call.1} parent=1 // pred_check_branch
      %38 = sbr.rel (0) target = $region17
    $region16: #{tpu_custom_call.1} parent=1 // pred_region
      %39 = dma.done [#allocation3], 256
    $region17: #{tpu_custom_call.1} parent=1 // pred_fallthru
      _
    // Predicated region
    $region18: #{tpu_custom_call.1} parent=1 // pred_check
      _
    $region19: #{tpu_custom_call.1} parent=1 // pred_check_branch
      %41 = sbr.rel (0) target = $region21
    $region20: #{tpu_custom_call.1} parent=1 // pred_region
      %42 = dma.done [#allocation6], 1536
    $region21: #{tpu_custom_call.1} parent=1 // pred_fallthru
      _
    %v44 = vld [vmem:[#allocation2] sm:$0xff]
    %v45 = vld [vmem:[#allocation2 + $0x8] sm:$0xff]
    %v46 = vld [vmem:[#allocation5] sm:$0xf]
    %v47 = vld [vmem:[#allocation5 + $0x4] sm:$0xf]
    %v48 = vld [vmem:[#allocation5 + $0x8] sm:$0xf]
    %v49 = vld [vmem:[#allocation5 + $0xc] sm:$0xf]
    %v50 = vld [vmem:[#allocation5 + $0x10] sm:$0xf]
    %v51 = vld [vmem:[#allocation5 + $0x14] sm:$0xf]
    %v52 = vld [vmem:[#allocation5 + $0x18] sm:$0xf]
    %v53 = vld [vmem:[#allocation5 + $0x1c] sm:$0xf]
    %v54 = vld [vmem:[#allocation5 + $0x20] sm:$0xf]
    %v55 = vld [vmem:[#allocation5 + $0x24] sm:$0xf]
    %v56 = vld [vmem:[#allocation5 + $0x28] sm:$0xf]
    %v57 = vld [vmem:[#allocation5 + $0x2c] sm:$0xf]
    %v58 = vld [vmem:[#allocation5 + $0x30] sm:$0xf]
    %v59 = vld [vmem:[#allocation5 + $0x34] sm:$0xf]
    %v60 = vld [vmem:[#allocation5 + $0x38] sm:$0xf]
    %v61 = vld [vmem:[#allocation5 + $0x3c] sm:$0xf]
    %v62 = vld [vmem:[#allocation5 + $0x40] sm:$0xf]
    %v63 = vld [vmem:[#allocation5 + $0x44] sm:$0xf]
    %v64 = vld [vmem:[#allocation5 + $0x48] sm:$0xf]
    %v65 = vld [vmem:[#allocation5 + $0x4c] sm:$0xf]
    %v66 = vld [vmem:[#allocation5 + $0x50] sm:$0xf]
    %v67 = vld [vmem:[#allocation5 + $0x54] sm:$0xf]
    %v68 = vld [vmem:[#allocation5 + $0x58] sm:$0xf]
    %v69 = vld [vmem:[#allocation5 + $0x5c] sm:$0xf]
    %v70 = vld [vmem:[%s2] sm:$0x1]
    %v72 = vlaneseq
    %v73 = vshrl.u32 %v72, 7
    %v74 = vsub.s32 0, %v73
    %v75 = vrot.slane %v70, %v74
    %v79 = vunpack.c.l.b16 %v44
    %v80 = vunpack.c.h.b16 %v44
    %v81 = vunpack.c.l.b16 %v45
    %v82 = vunpack.c.h.b16 %v45
    %v83 = vpack.c.b16 %v81, %v79
    %v84 = vpack.c.b16 %v82, %v80
    %v110 = vunpack.c.l.b16 %v46
    %v111 = vunpack.c.l.b16 %v47
    %v112 = vunpack.c.l.b16 %v48
    %v113 = vunpack.c.l.b16 %v49
    %v114 = vunpack.c.l.b16 %v50
    %v115 = vunpack.c.l.b16 %v51
    %v116 = vunpack.c.l.b16 %v52
    %v117 = vunpack.c.l.b16 %v53
    %v118 = vunpack.c.l.b16 %v54
    %v119 = vunpack.c.l.b16 %v55
    %v120 = vunpack.c.l.b16 %v56
    %v121 = vunpack.c.l.b16 %v57
    %v122 = vunpack.c.l.b16 %v58
    %v123 = vunpack.c.l.b16 %v59
    %v124 = vunpack.c.l.b16 %v60
    %v125 = vunpack.c.l.b16 %v61
    %v126 = vunpack.c.l.b16 %v62
    %v127 = vunpack.c.l.b16 %v63
    %v128 = vunpack.c.l.b16 %v64
    %v129 = vunpack.c.l.b16 %v65
    %v130 = vunpack.c.l.b16 %v66
    %v131 = vunpack.c.l.b16 %v67
    %v132 = vunpack.c.l.b16 %v68
    %v133 = vunpack.c.l.b16 %v69
    %v134 = vpack.c.b16 %v111, %v110
    %v135 = vpack.c.b16 %v113, %v112
    %v136 = vpack.c.b16 %v115, %v114
    %v137 = vpack.c.b16 %v117, %v116
    %v138 = vpack.c.b16 %v119, %v118
    %v139 = vpack.c.b16 %v121, %v120
    %v140 = vpack.c.b16 %v123, %v122
    %v141 = vpack.c.b16 %v125, %v124
    %v142 = vpack.c.b16 %v127, %v126
    %v143 = vpack.c.b16 %v129, %v128
    %v144 = vpack.c.b16 %v131, %v130
    %v145 = vpack.c.b16 %v133, %v132
    %vm158 = vcmask 523264
    %v160 = vsel %vm158, %v84, 0
    %162 = vmatprep.subr.bf16.mxu0 0
    %163 = vmatpush1.bf16.msra.mxu0 %v134
    %164 = vmatprep.subr.bf16.mxu0 0
    %165 = vmatpush1.bf16.msra.mxu0 %v135
    %166 = vmatprep.subr.bf16.mxu0 0
    %167 = vmatpush1.bf16.msra.mxu0 %v136
    %168 = vmatprep.subr.bf16.mxu0 0
    %169 = vmatpush1.bf16.msra.mxu0 %v137
    %170 = vmatprep.subr.bf16.mxu0 0
    %171 = vmatpush1.bf16.msra.mxu0 %v138
    %172 = vmatprep.subr.bf16.mxu0 0
    %173 = vmatpush1.bf16.msra.mxu0 %v139
    %174 = vmatprep.subr.bf16.mxu0 0
    %175 = vmatpush1.bf16.msra.mxu0 %v140
    %176 = vmatprep.subr.bf16.mxu0 0
    %177 = vmatpush1.bf16.msra.mxu0 %v141
    %178 = vmatprep.subr.bf16.mxu0 0
    %179 = vmatpush1.bf16.msra.mxu0 %v142
    %180 = vmatprep.subr.bf16.mxu0 0
    %181 = vmatpush1.bf16.msra.mxu0 %v143
    %182 = vmatprep.subr.bf16.mxu0 0
    %183 = vmatpush1.bf16.msra.mxu0 %v144
    %184 = vmatprep.subr.bf16.mxu0 0
    %185 = vmatpush1.bf16.msra.mxu0 %v145
    %186 = vmatprep.subr.bf16.mxu0 0
    %187 = vmatpush1.bf16.msra.mxu0 0
    %188 = vmatprep.subr.bf16.mxu0 0
    %189 = vmatpush1.bf16.msra.mxu0 0
    %190 = vmatprep.subr.bf16.mxu0 0
    %191 = vmatpush1.bf16.msra.mxu0 0
    %192 = vmatprep.subr.bf16.mxu0 0
    %193 = vmatpush1.bf16.msra.mxu0 0
    %194 = vmatprep.mubr.bf16.mxu0 %v160
    %195 = vmatmul.mubr.bf16.gmra.mrb[0].mxu0 %v83
    %v196 = vpop.f32.mrb[0].mxu0
    %v197 = vadd.f32 %v75, %v196
    %v198 = vpop.f32.mrb[0].mxu0
    %v199 = vpop.f32.mrb[0].mxu0
    %v200 = vadd.f32 %v75, %v199
    %v201 = vpop.f32.mrb[0].mxu0
    %202 = vdwg.mxu0
    %203 = vst [vmem:[#allocation7] sm:$0xff] %v197
    %204 = vst [vmem:[#allocation7 + $0x8] sm:$0xff] %v200
    // Predicated region
    $region22: #{tpu_custom_call.1} parent=1 // pred_check
      _
    $region23: #{tpu_custom_call.1} parent=1 // pred_check_branch
      %206 = sbr.rel (0) target = $region25
    $region24: #{tpu_custom_call.1} parent=1 // pred_region
      %s208 = ssub.s32 256, 256
      %209 = vsyncadd [#allocation4], %s208
      %s210 = sshll.u32 [#allocation7], 4
      %s211 = int_to_ptr.vmem [resolvable:$true] %s210
      %216 = dma.vmem_to_hbm [thread:$0]  %s211, 256, %s3, [#allocation4], 128, 128, 8
    $region25: #{tpu_custom_call.1} parent=1 // pred_fallthru
      _
    // Predicated region
    $region26: #{tpu_custom_call.1} parent=1 // pred_check
      _
    $region27: #{tpu_custom_call.1} parent=1 // pred_check_branch
      %218 = sbr.rel (0) target = $region29
    $region28: #{tpu_custom_call.1} parent=1 // pred_region
      %219 = dma.done [#allocation4], 256
    $region29: #{tpu_custom_call.1} parent=1 // pred_fallthru
      _
    %220 = vsyncpa [#allocation3], 1
    %221 = vsyncpa [#allocation6], 1
    %222 = vsyncpa [#allocation4], 1

</llo_original>
